<compile_context>
chip_gen: v7x
topology: tpu7x:2x2x1
jax: 0.10.0
libtpu: 0.0.40
codegen_flags: <defaults>
</compile_context>

<pallas_src>
import jax
import jax.numpy as jnp
from jax.experimental import pallas as pl
from jax.experimental.pallas import tpu as pltpu


def _round_up(x: int, m: int) -> int:
    return (x + m - 1) // m * m


def _ffdot_kernel(xg_ref, xt_ref, w1_ref, b1_ref, w2t_ref, b2t_ref, out_ref):
    """One batch tile: fused extractor + feature_processor + dot + sigmoid."""
    tb = out_ref.shape[-1]  # batch tile size (static)

    # Stack ground-truth and tested tiles -> a single matmul chain.
    # (VMEM concat of two (TB, S) bf16 tiles; weights pushed once per step.)
    x = jnp.concatenate([xg_ref[...], xt_ref[...]], axis=0)        # (2*TB, S) bf16

    # Layer 1: Linear + ReLU.  bf16 x bf16 -> f32 accumulate on the MXU.
    h = jnp.dot(x, w1_ref[...],
                preferred_element_type=jnp.float32) + b1_ref[...]  # (2*TB, H) f32
    h = jnp.maximum(h, 0.0)

    # Layer 2, computed transposed so the batch ends up on lanes:
    #   e_T[e, b] = sum_h w2t[e, h] * h[b, h]      (NT matmul, f32 accumulate)
    e_t = jax.lax.dot_general(
        w2t_ref[...], h.astype(jnp.bfloat16),
        dimension_numbers=(((1,), (1,)), ((), ())),
        preferred_element_type=jnp.float32,
    ) + b2t_ref[...]                                               # (E, 2*TB) f32

    eg = e_t[:, :tb]                                               # (E, TB)
    et = e_t[:, tb:]                                               # (E, TB)

    # Per-batch dot product: sublane (E) reduction -> lane-dense (1, TB) row.
    score = jnp.sum(eg * et, axis=0, keepdims=True)                # (1, TB) f32

    # sigmoid = 1 / (1 + exp(-x)); exp and approx reciprocal both go to the EUP.
    prob = pl.reciprocal(1.0 + jnp.exp(-score), approx=True)
    out_ref[0] = prob                                              # (1, TB) store


def ffdot_forward(x_gt, x_test, w1, b1, w2, b2, *, block_b: int = 512):
    """FFDot forward.  x_* : (B, S) -> prob : (B,)."""
    assert block_b % 128 == 0
    B, S = x_gt.shape
    H = w1.shape[1]
    E = w2.shape[1]
    assert x_test.shape == (B, S)
    assert w1.shape == (S, H) and b1.size == H
    assert w2.shape == (H, E) and b2.size == E

    # Batch tile: biggest of block_b that is useful, lane-aligned (mult of 128).
    TB = min(block_b, _round_up(B, 128))
    B_pad = _round_up(B, TB)
    nt = B_pad // TB

    if B_pad != B:
        pad = ((0, B_pad - B), (0, 0))
        x_gt = jnp.pad(x_gt, pad)
        x_test = jnp.pad(x_test, pad)

    # bf16 matmul operands (f32 accumulation inside the kernel).
    xg = x_gt.astype(jnp.bfloat16)
    xt = x_test.astype(jnp.bfloat16)
    w1b = w1.astype(jnp.bfloat16)                       # (S, H)
    w2t = jnp.transpose(w2).astype(jnp.bfloat16)        # (E, H)  pre-transposed once
    b1f = b1.reshape(1, H).astype(jnp.float32)          # (1, H)
    b2t = b2.reshape(E, 1).astype(jnp.float32)          # (E, 1)  lane-broadcast bias

    # VMEM budget (double-buffered tiles + resident weights + intermediates).
    vmem_bytes = (
        2 * 2 * TB * S * 2            # x_gt / x_test tiles, 2 buffers, bf16
        + 2 * (S * H + E * H) * 2     # w1 / w2t
        + 2 * (H + E) * 4             # biases
        + 2 * TB * 4                  # output row, 2 buffers
        + 2 * TB * S * 2              # stacked x
        + 2 * 2 * TB * H * 4          # h (f32) + bf16 copy
        + 2 * E * 2 * TB * 4          # e_t + products
    )
    vmem_limit = min(max(2 * vmem_bytes, 16 * 1024 * 1024), 64 * 1024 * 1024)

    cost = pl.CostEstimate(
        flops=2 * (2 * B_pad) * S * H + 2 * (2 * B_pad) * H * E + 2 * B_pad * E,
        transcendentals=B_pad,
        bytes_accessed=2 * B_pad * S * 2 + (S * H + E * H) * 2 + (H + E) * 4
        + B_pad * 4,
    )

    out = pl.pallas_call(
        _ffdot_kernel,
        out_shape=jax.ShapeDtypeStruct((nt, 1, TB), jnp.float32),
        grid=(nt,),
        in_specs=[
            pl.BlockSpec((TB, S), lambda i: (i, 0)),    # x_gt tile (pipelined)
            pl.BlockSpec((TB, S), lambda i: (i, 0)),    # x_test tile (pipelined)
            pl.BlockSpec((S, H), lambda i: (0, 0)),     # w1  (resident)
            pl.BlockSpec((1, H), lambda i: (0, 0)),     # b1  (resident)
            pl.BlockSpec((E, H), lambda i: (0, 0)),     # w2^T (resident)
            pl.BlockSpec((E, 1), lambda i: (0, 0)),     # b2^T (resident)
        ],
        out_specs=pl.BlockSpec((1, 1, TB), lambda i: (i, 0, 0)),  # lane-dense row
        compiler_params=pltpu.CompilerParams(
            dimension_semantics=("parallel",),
            vmem_limit_bytes=vmem_limit,
        ),
        cost_estimate=cost,
    )(xg, xt, w1b, b1f, w2t, b2t)

    # (nt, 1, TB) -> (B,)   (matches torch .squeeze())
    return out.reshape(B_pad)[:B]


def _reference(x_gt, x_test, w1, b1, w2, b2):
    def embed(x):
        h = jnp.maximum(x @ w1 + b1, 0.0)
        return h @ w2 + b2

    eg = embed(x_gt)
    et = embed(x_test)
    score = jnp.sum(eg * et, axis=-1)
    return jax.nn.sigmoid(score)


if __name__ == "__main__":
    # Small shapes consistent with the forward: audio (batch, seq_len).
    # B chosen non-multiple of the tile to exercise padding + a multi-step grid.
    B, S, H, E = 200, 256, 128, 128

    key = jax.random.PRNGKey(0)
    k_xg, k_xt, k_w1, k_b1, k_w2, k_b2 = jax.random.split(key, 6)

    x_gt = jax.random.normal(k_xg, (B, S), dtype=jnp.float32)
    x_test = jax.random.normal(k_xt, (B, S), dtype=jnp.float32)

    # Deterministic synthetic parameters (extractor + feature_processor).
    # TODO(synk): the real extractor/feature_processor are injected black-box
    # modules; they are modeled here as Linear+ReLU and Linear.
    w1 = jax.random.normal(k_w1, (S, H), dtype=jnp.float32) * (1.0 / jnp.sqrt(S))
    b1 = jax.random.normal(k_b1, (1, H), dtype=jnp.float32) * 0.01
    w2 = jax.random.normal(k_w2, (H, E), dtype=jnp.float32) * (1.0 / jnp.sqrt(H))
    b2 = jax.random.normal(k_b2, (1, E), dtype=jnp.float32) * 0.01

    prob = ffdot_forward(x_gt, x_test, w1, b1, w2, b2, block_b=128)
    jax.block_until_ready(prob)

    ref = _reference(x_gt, x_test, w1, b1, w2, b2)
    assert prob.shape == (B,)
    # bf16 matmuls + approx reciprocal -> loosened tolerance vs f32 reference.
    assert jnp.allclose(prob, ref, atol=3e-2, rtol=0.0), (prob, ref)

    print("KERNEL_OK")
</pallas_src>

<mosaic_0001>
module attributes {stable_mosaic.version = 11 : i64} {
  func.func @_ffdot_kernel(%arg0: i32, %arg1: memref<128x256xbf16, #tpu.memory_space<vmem>>, %arg2: memref<128x256xbf16, #tpu.memory_space<vmem>>, %arg3: memref<256x128xbf16, #tpu.memory_space<vmem>>, %arg4: memref<1x128xf32, #tpu.memory_space<vmem>>, %arg5: memref<128x128xbf16, #tpu.memory_space<vmem>>, %arg6: memref<128x1xf32, #tpu.memory_space<vmem>>, %arg7: memref<1x1x128xf32, #tpu.memory_space<vmem>>) attributes {dimension_semantics = [#tpu.dimension_semantics<parallel>], iteration_bounds = array<i64: 2>, scalar_prefetch = 0 : i64, scratch_operands = 0 : i64, tpu.core_type = #tpu.core_type<tc>, window_params = [{transform_indices = @transform_0, window_bounds = array<i64: 128, 256>}, {transform_indices = @transform_1, window_bounds = array<i64: 128, 256>}, {pipeline_mode = #tpu.pipeline_mode<synchronous>, transform_indices = @transform_2, window_bounds = array<i64: 256, 128>}, {pipeline_mode = #tpu.pipeline_mode<synchronous>, transform_indices = @transform_3, window_bounds = array<i64: 1, 128>}, {pipeline_mode = #tpu.pipeline_mode<synchronous>, transform_indices = @transform_4, window_bounds = array<i64: 128, 128>}, {pipeline_mode = #tpu.pipeline_mode<synchronous>, transform_indices = @transform_5, window_bounds = array<i64: 128, 1>}, {transform_indices = @transform_6, window_bounds = array<i64: 1, 1, 128>}]} {
    %c0 = arith.constant 0 : index
    %c0_0 = arith.constant 0 : index
    %0 = vector.load %arg1[%c0, %c0_0] : memref<128x256xbf16, #tpu.memory_space<vmem>>, vector<128x256xbf16>
    %c0_1 = arith.constant 0 : index
    %c0_2 = arith.constant 0 : index
    %1 = vector.load %arg2[%c0_1, %c0_2] : memref<128x256xbf16, #tpu.memory_space<vmem>>, vector<128x256xbf16>
    %2 = tpu.concatenate %0, %1 in 0 : vector<128x256xbf16>, vector<128x256xbf16> -> vector<256x256xbf16>
    %c0_3 = arith.constant 0 : index
    %c0_4 = arith.constant 0 : index
    %3 = vector.load %arg3[%c0_3, %c0_4] : memref<256x128xbf16, #tpu.memory_space<vmem>>, vector<256x128xbf16>
    %cst = arith.constant dense<0.000000e+00> : vector<256x128xf32>
    %4 = tpu.matmul %2, %3, %cst {dimension_numbers = #tpu.dot_dimension_numbers<[1], [0], [0], [1], [0, 0, 1, 1], [], []>} : vector<256x256xbf16>, vector<256x128xbf16>, vector<256x128xf32> -> vector<256x128xf32>
    %c0_5 = arith.constant 0 : index
    %c0_6 = arith.constant 0 : index
    %5 = vector.load %arg4[%c0_5, %c0_6] : memref<1x128xf32, #tpu.memory_space<vmem>>, vector<1x128xf32>
    %6 = vector.broadcast %5 : vector<1x128xf32> to vector<256x128xf32>
    %7 = arith.addf %4, %6 : vector<256x128xf32>
    %cst_7 = arith.constant 0.000000e+00 : f32
    %8 = vector.broadcast %cst_7 : f32 to vector<256x128xf32>
    %9 = arith.maximumf %7, %8 : vector<256x128xf32>
    %c0_8 = arith.constant 0 : index
    %c0_9 = arith.constant 0 : index
    %10 = vector.load %arg5[%c0_8, %c0_9] : memref<128x128xbf16, #tpu.memory_space<vmem>>, vector<128x128xbf16>
    %11 = arith.truncf %9 : vector<256x128xf32> to vector<256x128xbf16>
    %cst_10 = arith.constant dense<0.000000e+00> : vector<128x256xf32>
    %12 = tpu.matmul %10, %11, %cst_10 {dimension_numbers = #tpu.dot_dimension_numbers<[1], [1], [0], [0], [0, 0, 1, 0], [], []>} : vector<128x128xbf16>, vector<256x128xbf16>, vector<128x256xf32> -> vector<128x256xf32>
    %c0_11 = arith.constant 0 : index
    %c0_12 = arith.constant 0 : index
    %13 = vector.load %arg6[%c0_11, %c0_12] : memref<128x1xf32, #tpu.memory_space<vmem>>, vector<128x1xf32>
    %14 = vector.broadcast %13 : vector<128x1xf32> to vector<128x256xf32>
    %15 = arith.addf %12, %14 : vector<128x256xf32>
    %16 = vector.extract_strided_slice %15 {offsets = [0, 0], sizes = [128, 128], strides = [1, 1]} : vector<128x256xf32> to vector<128x128xf32>
    %17 = vector.extract_strided_slice %15 {offsets = [0, 128], sizes = [128, 128], strides = [1, 1]} : vector<128x256xf32> to vector<128x128xf32>
    %18 = arith.mulf %16, %17 : vector<128x128xf32>
    %cst_13 = arith.constant dense<0.000000e+00> : vector<128xf32>
    %19 = vector.multi_reduction <add>, %18, %cst_13 [0] : vector<128x128xf32> to vector<128xf32>
    %20 = vector.shape_cast %19 : vector<128xf32> to vector<1x128xf32>
    %cst_14 = arith.constant 0.000000e+00 : f32
    %21 = vector.broadcast %cst_14 : f32 to vector<1x128xf32>
    %22 = arith.subf %21, %20 : vector<1x128xf32>
    %23 = math.exp %22 : vector<1x128xf32>
    %cst_15 = arith.constant 1.000000e+00 : f32
    %24 = vector.broadcast %cst_15 : f32 to vector<1x128xf32>
    %25 = arith.addf %24, %23 : vector<1x128xf32>
    %26 = tpu.reciprocal %25 {approx = true} : vector<1x128xf32> -> vector<1x128xf32>
    %c0_16 = arith.constant 0 : index
    %c0_17 = arith.constant 0 : index
    %c0_18 = arith.constant 0 : index
    %27 = vector.load %arg7[%c0_16, %c0_17, %c0_18] : memref<1x1x128xf32, #tpu.memory_space<vmem>>, vector<1x1x128xf32>
    %28 = vector.shape_cast %27 : vector<1x1x128xf32> to vector<1x128xf32>
    %29 = vector.shape_cast %26 : vector<1x128xf32> to vector<1x1x128xf32>
    tpu.vector_store %arg7[%c0_16, %c0_17, %c0_18], %29 {strides = array<i32>} : memref<1x1x128xf32, #tpu.memory_space<vmem>>, vector<1x1x128xf32>,
    return
  }
  func.func @transform_0(%arg0: i32) -> (i32, i32) {
    %c0_i32 = arith.constant 0 : i32
    %c0_i32_0 = arith.constant 0 : i32
    return %arg0, %c0_i32 : i32, i32
  }
  func.func @transform_1(%arg0: i32) -> (i32, i32) {
    %c0_i32 = arith.constant 0 : i32
    %c0_i32_0 = arith.constant 0 : i32
    return %arg0, %c0_i32 : i32, i32
  }
  func.func @transform_2(%arg0: i32) -> (i32, i32) {
    %c0_i32 = arith.constant 0 : i32
    %c0_i32_0 = arith.constant 0 : i32
    %c0_i32_1 = arith.constant 0 : i32
    return %c0_i32, %c0_i32_0 : i32, i32
  }
  func.func @transform_3(%arg0: i32) -> (i32, i32) {
    %c0_i32 = arith.constant 0 : i32
    %c0_i32_0 = arith.constant 0 : i32
    %c0_i32_1 = arith.constant 0 : i32
    return %c0_i32, %c0_i32_0 : i32, i32
  }
  func.func @transform_4(%arg0: i32) -> (i32, i32) {
    %c0_i32 = arith.constant 0 : i32
    %c0_i32_0 = arith.constant 0 : i32
    %c0_i32_1 = arith.constant 0 : i32
    return %c0_i32, %c0_i32_0 : i32, i32
  }
  func.func @transform_5(%arg0: i32) -> (i32, i32) {
    %c0_i32 = arith.constant 0 : i32
    %c0_i32_0 = arith.constant 0 : i32
    %c0_i32_1 = arith.constant 0 : i32
    return %c0_i32, %c0_i32_0 : i32, i32
  }
  func.func @transform_6(%arg0: i32) -> (i32, i32, i32) {
    %c0_i32 = arith.constant 0 : i32
    %c0_i32_0 = arith.constant 0 : i32
    %c0_i32_1 = arith.constant 0 : i32
    return %arg0, %c0_i32, %c0_i32_0 : i32, i32, i32
  }
}

</mosaic_0001>

<llo_original>
// kernel: tpu_custom_call.1
$region0: #{tpu_custom_call.1}
  #allocation0 [shape = 'u32[]', space=smem, size = 0x4, offset = 0x4, fixed_abs, tag = 'smem constant byte address 0x4 - core index']
  #allocation1 [shape = 'u32[144,128]{1,0:T(1,128)}', space=vmem, size = 0x12000, scoped, tag = 'internal scratch']
  %s0 = inlined_call_operand.hbm [shape: bf16[256,256], index: 0, kind: input, shape index: {}]
  %s1 = inlined_call_operand.hbm [shape: bf16[256,256], index: 1, kind: input, shape index: {}]
  %s2 = inlined_call_operand.vmem [shape: bf16[256,128], index: 2, kind: input, shape index: {}]
  %s3 = inlined_call_operand.vmem [shape: f32[1,128], index: 3, kind: input, shape index: {}]
  %s4 = inlined_call_operand.hbm [shape: bf16[128,128], index: 4, kind: input, shape index: {}]
  %s5 = inlined_call_operand.vmem [shape: f32[128,1], index: 5, kind: input, shape index: {}]
  %s6 = inlined_call_operand.hbm [shape: f32[2,1,128], index: 6, kind: output, shape index: {}]
  %s7 = sld [smem:[#allocation0]]
  $region69: #{tpu_custom_call.1} parent=0
    _
  %s9 = ssub.s32 1, %s7
  %s10 = scalar_select 0, %s9, %s7
  $region1: #{tpu_custom_call.1} parent=0
    #allocation2 [shape = 'u8[131072]{0}', space=vmem, size = 0x20000, scoped, tag = 'input window, operand 0']
    #allocation3 [shape = 's32[2]{0}', space=sflag, size = 0x8, scoped, tag = 'scoped memory for tpu_custom_call.1']
    #allocation4 [shape = 's32[2]{0}', space=sflag, size = 0x8, scoped, tag = 'scoped memory for tpu_custom_call.1']
    #allocation5 [shape = 'u8[131072]{0}', space=vmem, size = 0x20000, scoped, tag = 'input window, operand 1']
    #allocation6 [shape = 's32[2]{0}', space=sflag, size = 0x8, scoped, tag = 'scoped memory for tpu_custom_call.1']
    #allocation7 [shape = 'u8[32768]{0}', space=vmem, size = 0x8000, scoped, tag = 'input window, operand 4, single buffered']
    #allocation8 [shape = 'u8[1024]{0}', space=vmem, size = 0x400, scoped, tag = 'output window, operand 0']
    %11 = vsyncpa [#allocation3], 0
    %s12 = scalar_lea.sflag [#allocation3], 1
    %13 = vsyncpa %s12, 0
    %14 = vsyncpa [#allocation6], 0
    %s15 = scalar_lea.sflag [#allocation6], 1
    %16 = vsyncpa %s15, 0
    %17 = vsyncpa [#allocation4], 0
    %s18 = scalar_lea.sflag [#allocation4], 1
    %19 = vsyncpa %s18, 0
    loop: start=0, step=1, limit=4
    $region2: #{tpu_custom_call.1} parent=1 // loop_pre_header
      _
    $region3: #{tpu_custom_call.1} parent=1 // loop_header
      %s21 = sphi 0, %s25
      %p22 = scmp.ge.s32.totalorder %s21, 4
      %s31 = sphi 0, %s33
      %s34 = sphi 0, %s31
      %s35 = sphi 0, %s34
      %s51 = sphi 0, %s35
      %s57 = sphi 0, %s59
      %s60 = sphi 0, %s57
      %s61 = sphi 0, %s60
      %s77 = sphi 0, %s61
      %s81 = sphi 0, %s81
      %s83 = sphi 0, %s81
      %s84 = sphi 0, %s83
      %s98 = sphi 0, %s84
      %s102 = sphi 0, %s102
      %s104 = sphi 0, %s102
      %s105 = sphi 0, %s104
      %s119 = sphi 0, %s105
      %s123 = sphi 0, %s123
      %s125 = sphi 0, %s123
      %s126 = sphi 0, %s125
      %s140 = sphi 0, %s126
      %s144 = sphi 0, %s144
      %s146 = sphi 0, %s144
      %s147 = sphi 0, %s146
      %s161 = sphi 0, %s147
      %s167 = sphi 0, %s169
      %s170 = sphi 0, %s167
      %s171 = sphi 0, %s170
      %s187 = sphi 0, %s171
    $region4: #{tpu_custom_call.1} parent=1 // loop_header_branch
      %24 = sbr.rel (%p22) target = $region8
    $region5: #{tpu_custom_call.1} parent=1 // loop_body
      %s26 = ssub.s32 %s21, 1
      %s27 = ssub.s32 %s21, 2
      %s28 = sadd.s32 %s21, 1
      %s29 = ssub.s32 %s21, %s28
      %p30 = scmp.eq.s32.totalorder %s29, 0
      %s32 = sadd.s32 %s31, 1
      %s33 = scalar_select %p30, %s31, %s32
      %p36 = pneg %p30
      %p37 = scmp.eq.s32.totalorder %s21, 1
      %p38 = por %p36, %p37
      %p39 = scmp.ne.s32.totalorder %s31, %s34
      %p40 = scmp.eq.s32.totalorder %s21, 0
      %p41 = por %p39, %p40
      %p42 = scmp.ne.s32.totalorder %s31, %s34
      %p43 = scmp.eq.s32.totalorder %s26, 1
      %p44 = por %p42, %p43
      %p45 = scmp.ne.s32.totalorder %s34, %s35
      %p46 = scmp.eq.s32.totalorder %s26, 0
      %p47 = por %p45, %p46
      %p48 = scmp.ne.s32.totalorder %s34, %s35
      %p49 = scmp.eq.s32.totalorder %s27, 1
      %p50 = por %p48, %p49
      %p52 = scmp.ne.s32.totalorder %s35, %s51
      %p53 = scmp.eq.s32.totalorder %s27, 0
      %p54 = por %p52, %p53
      %s55 = ssub.s32 %s21, %s28
      %p56 = scmp.eq.s32.totalorder %s55, 0
      %s58 = sadd.s32 %s57, 1
      %s59 = scalar_select %p56, %s57, %s58
      %p62 = pneg %p56
      %p63 = scmp.eq.s32.totalorder %s21, 1
      %p64 = por %p62, %p63
      %p65 = scmp.ne.s32.totalorder %s57, %s60
      %p66 = scmp.eq.s32.totalorder %s21, 0
      %p67 = por %p65, %p66
      %p68 = scmp.ne.s32.totalorder %s57, %s60
      %p69 = scmp.eq.s32.totalorder %s26, 1
      %p70 = por %p68, %p69
      %p71 = scmp.ne.s32.totalorder %s60, %s61
      %p72 = scmp.eq.s32.totalorder %s26, 0
      %p73 = por %p71, %p72
      %p74 = scmp.ne.s32.totalorder %s60, %s61
      %p75 = scmp.eq.s32.totalorder %s27, 1
      %p76 = por %p74, %p75
      %p78 = scmp.ne.s32.totalorder %s61, %s77
      %p79 = scmp.eq.s32.totalorder %s27, 0
      %p80 = por %p78, %p79
      %s82 = sadd.s32 %s81, 1
      %p85 = scmp.eq.s32.totalorder %s21, 1
      %p86 = scmp.ne.s32.totalorder %s81, %s83
      %p87 = scmp.eq.s32.totalorder %s21, 0
      %p88 = por %p86, %p87
      %p89 = scmp.ne.s32.totalorder %s81, %s83
      %p90 = scmp.eq.s32.totalorder %s26, 1
      %p91 = por %p89, %p90
      %p92 = scmp.ne.s32.totalorder %s83, %s84
      %p93 = scmp.eq.s32.totalorder %s26, 0
      %p94 = por %p92, %p93
      %p95 = scmp.ne.s32.totalorder %s83, %s84
      %p96 = scmp.eq.s32.totalorder %s27, 1
      %p97 = por %p95, %p96
      %p99 = scmp.ne.s32.totalorder %s84, %s98
      %p100 = scmp.eq.s32.totalorder %s27, 0
      %p101 = por %p99, %p100
      %s103 = sadd.s32 %s102, 1
      %p106 = scmp.eq.s32.totalorder %s21, 1
      %p107 = scmp.ne.s32.totalorder %s102, %s104
      %p108 = scmp.eq.s32.totalorder %s21, 0
      %p109 = por %p107, %p108
      %p110 = scmp.ne.s32.totalorder %s102, %s104
      %p111 = scmp.eq.s32.totalorder %s26, 1
      %p112 = por %p110, %p111
      %p113 = scmp.ne.s32.totalorder %s104, %s105
      %p114 = scmp.eq.s32.totalorder %s26, 0
      %p115 = por %p113, %p114
      %p116 = scmp.ne.s32.totalorder %s104, %s105
      %p117 = scmp.eq.s32.totalorder %s27, 1
      %p118 = por %p116, %p117
      %p120 = scmp.ne.s32.totalorder %s105, %s119
      %p121 = scmp.eq.s32.totalorder %s27, 0
      %p122 = por %p120, %p121
      %s124 = sadd.s32 %s123, 1
      %p127 = scmp.eq.s32.totalorder %s21, 1
      %p128 = scmp.ne.s32.totalorder %s123, %s125
      %p129 = scmp.eq.s32.totalorder %s21, 0
      %p130 = por %p128, %p129
      %p131 = scmp.ne.s32.totalorder %s123, %s125
      %p132 = scmp.eq.s32.totalorder %s26, 1
      %p133 = por %p131, %p132
      %p134 = scmp.ne.s32.totalorder %s125, %s126
      %p135 = scmp.eq.s32.totalorder %s26, 0
      %p136 = por %p134, %p135
      %p137 = scmp.ne.s32.totalorder %s125, %s126
      %p138 = scmp.eq.s32.totalorder %s27, 1
      %p139 = por %p137, %p138
      %p141 = scmp.ne.s32.totalorder %s126, %s140
      %p142 = scmp.eq.s32.totalorder %s27, 0
      %p143 = por %p141, %p142
      %s145 = sadd.s32 %s144, 1
      %p148 = scmp.eq.s32.totalorder %s21, 1
      %p149 = scmp.ne.s32.totalorder %s144, %s146
      %p150 = scmp.eq.s32.totalorder %s21, 0
      %p151 = por %p149, %p150
      %p152 = scmp.ne.s32.totalorder %s144, %s146
      %p153 = scmp.eq.s32.totalorder %s26, 1
      %p154 = por %p152, %p153
      %p155 = scmp.ne.s32.totalorder %s146, %s147
      %p156 = scmp.eq.s32.totalorder %s26, 0
      %p157 = por %p155, %p156
      %p158 = scmp.ne.s32.totalorder %s146, %s147
      %p159 = scmp.eq.s32.totalorder %s27, 1
      %p160 = por %p158, %p159
      %p162 = scmp.ne.s32.totalorder %s147, %s161
      %p163 = scmp.eq.s32.totalorder %s27, 0
      %p164 = por %p162, %p163
      %s165 = ssub.s32 %s21, %s28
      %p166 = scmp.eq.s32.totalorder %s165, 0
      %s168 = sadd.s32 %s167, 1
      %s169 = scalar_select %p166, %s167, %s168
      %p172 = pneg %p166
      %p173 = scmp.eq.s32.totalorder %s21, 1
      %p174 = por %p172, %p173
      %p175 = scmp.ne.s32.totalorder %s167, %s170
      %p176 = scmp.eq.s32.totalorder %s21, 0
      %p177 = por %p175, %p176
      %p178 = scmp.ne.s32.totalorder %s167, %s170
      %p179 = scmp.eq.s32.totalorder %s26, 1
      %p180 = por %p178, %p179
      %p181 = scmp.ne.s32.totalorder %s170, %s171
      %p182 = scmp.eq.s32.totalorder %s26, 0
      %p183 = por %p181, %p182
      %p184 = scmp.ne.s32.totalorder %s170, %s171
      %p185 = scmp.eq.s32.totalorder %s27, 1
      %p186 = por %p184, %p185
      %p188 = scmp.ne.s32.totalorder %s171, %s187
      %p189 = scmp.eq.s32.totalorder %s27, 0
      %p190 = por %p188, %p189
      %p191 = scmp.le.s32.totalorder 1, %s21
      %p192 = scmp.lt.s32.totalorder %s21, 3
      %p193 = pnand %p191, %p192
      %p194 = pneg %p193
      // Predicated region
      $region9: #{tpu_custom_call.1} parent=5 // pred_check
        _
      $region10: #{tpu_custom_call.1} parent=5 // pred_check_branch
        %196 = sbr.rel (%p193) target = $region12
      $region11: #{tpu_custom_call.1} parent=5 // pred_region
        %s197 = ssub.s32 %s21, 1
        // Predicated region
        $region13: #{tpu_custom_call.1} parent=11 // pred_check
          %p198 = pneg %p94
        $region14: #{tpu_custom_call.1} parent=11 // pred_check_branch
          %200 = sbr.rel (%p198) target = $region16
        $region15: #{tpu_custom_call.1} parent=11 // pred_region
          _
        $region16: #{tpu_custom_call.1} parent=11 // pred_fallthru
          _
        // Predicated region
        $region17: #{tpu_custom_call.1} parent=11 // pred_check
          %p201 = pneg %p115
        $region18: #{tpu_custom_call.1} parent=11 // pred_check_branch
          %203 = sbr.rel (%p201) target = $region20
        $region19: #{tpu_custom_call.1} parent=11 // pred_region
          _
        $region20: #{tpu_custom_call.1} parent=11 // pred_fallthru
          _
        // Predicated region
        $region21: #{tpu_custom_call.1} parent=11 // pred_check
          %p204 = pneg %p136
        $region22: #{tpu_custom_call.1} parent=11 // pred_check_branch
          %206 = sbr.rel (%p204) target = $region24
        $region23: #{tpu_custom_call.1} parent=11 // pred_region
          %s208 = ssub.s32 1024, 1024
          %209 = vsyncadd [#allocation6], %s208
          %s210 = sshll.u32 [#allocation7], 4
          %s211 = int_to_ptr.vmem [resolvable:$true] %s210
          %216 = dma.hbm_to_vmem [thread:$0]  %s4, 1024, %s211, [#allocation6], 64, 64, 4
        $region24: #{tpu_custom_call.1} parent=11 // pred_fallthru
          _
        // Predicated region
        $region25: #{tpu_custom_call.1} parent=11 // pred_check
          %p217 = pneg %p157
        $region26: #{tpu_custom_call.1} parent=11 // pred_check_branch
          %219 = sbr.rel (%p217) target = $region28
        $region27: #{tpu_custom_call.1} parent=11 // pred_region
          _
        $region28: #{tpu_custom_call.1} parent=11 // pred_fallthru
          _
      $region12: #{tpu_custom_call.1} parent=5 // pred_fallthru
        _
      %p220 = scmp.lt.s32.totalorder %s21, 2
      // Predicated region
      $region29: #{tpu_custom_call.1} parent=5 // pred_check
        %p221 = pneg %p220
      $region30: #{tpu_custom_call.1} parent=5 // pred_check_branch
        %223 = sbr.rel (%p221) target = $region32
      $region31: #{tpu_custom_call.1} parent=5 // pred_region
        // Predicated region
        $region33: #{tpu_custom_call.1} parent=31 // pred_check
          %p224 = pneg %p41
        $region34: #{tpu_custom_call.1} parent=31 // pred_check_branch
          %226 = sbr.rel (%p224) target = $region36
        $region35: #{tpu_custom_call.1} parent=31 // pred_region
          %s227 = sand.u32 %s31, 1
          %s228 = scalar_lea.sflag [#allocation3], %s227
          %s229 = sand.u32 %s31, 1
          %s230 = smul.addr %s229, 128
          %s231 = scalar_lea.vmem [#allocation2], %s230
          %s232 = smul.u32 16, %s21
          %s234 = ssub.s32 2048, 2048
          %235 = vsyncadd %s228, %s234
          %s236 = smul.addr %s232, 2
          %s237 = smul.addr %s236, 64
          %s238 = scalar_lea.hbm %s0, %s237
          %s239 = sshll.u32 %s231, 4
          %s240 = int_to_ptr.vmem [resolvable:$true] %s239
          %245 = dma.hbm_to_vmem [thread:$0]  %s238, 2048, %s240, %s228, 128, 128, 8
        $region36: #{tpu_custom_call.1} parent=31 // pred_fallthru
          _
        // Predicated region
        $region37: #{tpu_custom_call.1} parent=31 // pred_check
          %p246 = pneg %p67
        $region38: #{tpu_custom_call.1} parent=31 // pred_check_branch
          %248 = sbr.rel (%p246) target = $region40
        $region39: #{tpu_custom_call.1} parent=31 // pred_region
          %s249 = sand.u32 %s21, 1
          %s250 = scalar_lea.sflag [#allocation6], %s249
          %s251 = sand.u32 %s57, 1
          %s252 = smul.addr %s251, 128
          %s253 = scalar_lea.vmem [#allocation5], %s252
          %s254 = smul.u32 16, %s21
          %s256 = ssub.s32 2048, 2048
          %257 = vsyncadd %s250, %s256
          %s258 = smul.addr %s254, 2
          %s259 = smul.addr %s258, 64
          %s260 = scalar_lea.hbm %s1, %s259
          %s261 = sshll.u32 %s253, 4
          %s262 = int_to_ptr.vmem [resolvable:$true] %s261
          %267 = dma.hbm_to_vmem [thread:$0]  %s260, 2048, %s262, %s250, 128, 128, 8
        $region40: #{tpu_custom_call.1} parent=31 // pred_fallthru
          _
      $region32: #{tpu_custom_call.1} parent=5 // pred_fallthru
        _
      %p268 = scmp.le.s32.totalorder 1, %s21
      %p269 = scmp.lt.s32.totalorder %s21, 3
      %p270 = pnand %p268, %p269
      %p271 = pneg %p270
      // Predicated region
      $region41: #{tpu_custom_call.1} parent=5 // pred_check
        _
      $region42: #{tpu_custom_call.1} parent=5 // pred_check_branch
        %273 = sbr.rel (%p270) target = $region44
      $region43: #{tpu_custom_call.1} parent=5 // pred_region
        %s274 = ssub.s32 %s21, 1
        %s275 = sand.u32 %s34, 1
        %s276 = scalar_lea.sflag [#allocation3], %s275
        %s277 = sand.u32 %s34, 1
        %s278 = smul.addr %s277, 128
        %s279 = scalar_lea.vmem [#allocation2], %s278
        // Predicated region
        $region45: #{tpu_custom_call.1} parent=43 // pred_check
          %p280 = pneg %p47
        $region46: #{tpu_custom_call.1} parent=43 // pred_check_branch
          %282 = sbr.rel (%p280) target = $region48
        $region47: #{tpu_custom_call.1} parent=43 // pred_region
          %283 = dma.done %s276, 2048
        $region48: #{tpu_custom_call.1} parent=43 // pred_fallthru
          _
        %s284 = sand.u32 %s26, 1
        %s285 = scalar_lea.sflag [#allocation6], %s284
        %s286 = sand.u32 %s60, 1
        %s287 = smul.addr %s286, 128
        %s288 = scalar_lea.vmem [#allocation5], %s287
        // Predicated region
        $region49: #{tpu_custom_call.1} parent=43 // pred_check
          %p289 = pneg %p73
        $region50: #{tpu_custom_call.1} parent=43 // pred_check_branch
          %291 = sbr.rel (%p289) target = $region52
        $region51: #{tpu_custom_call.1} parent=43 // pred_region
          %292 = dma.done %s285, 2048
        $region52: #{tpu_custom_call.1} parent=43 // pred_fallthru
          _
        // Predicated region
        $region53: #{tpu_custom_call.1} parent=43 // pred_check
          %p293 = pneg %p136
        $region54: #{tpu_custom_call.1} parent=43 // pred_check_branch
          %295 = sbr.rel (%p293) target = $region56
        $region55: #{tpu_custom_call.1} parent=43 // pred_region
          %296 = dma.done [#allocation6], 1024
        $region56: #{tpu_custom_call.1} parent=43 // pred_fallthru
          _
        %s297 = sand.u32 %s34, 1
        %s298 = scalar_lea.sflag [#allocation3], %s297
        %s299 = sand.u32 %s34, 1
        %s300 = smul.addr %s299, 128
        %s301 = scalar_lea.vmem [#allocation2], %s300
        %p302 = pneg %p47
        %p303 = pneg %p44
        %s304 = sand.u32 %s26, 1
        %s305 = scalar_lea.sflag [#allocation6], %s304
        %s306 = sand.u32 %s60, 1
        %s307 = smul.addr %s306, 128
        %s308 = scalar_lea.vmem [#allocation5], %s307
        %p309 = pneg %p73
        %p310 = pneg %p70
        %p311 = pneg %p94
        %p312 = pneg %p91
        %p313 = pneg %p115
        %p314 = pneg %p112
        %p315 = pneg %p136
        %p316 = pneg %p133
        %p317 = pneg %p157
        %p318 = pneg %p154
        %p319 = pneg %p183
        %p320 = pneg %p180
        %s321 = sand.u32 %s170, 1
        %s322 = scalar_lea.sflag [#allocation4], %s321
        %s323 = sand.u32 %s170, 1
        %s324 = scalar_lea.vmem [#allocation8], %s323
        %s325 = smul.u32 16, %s26
        %s326 = smul.u32 16, %s26
        %v328 = vld [vmem:[%s279] sm:$0xff]
        %v329 = vld [vmem:[%s279 + $0x8] sm:$0xff]
        %v330 = vld [vmem:[%s279 + $0x10] sm:$0xff]
        %v331 = vld [vmem:[%s279 + $0x18] sm:$0xff]
        %v332 = vld [vmem:[%s279 + $0x20] sm:$0xff]
        %v333 = vld [vmem:[%s279 + $0x28] sm:$0xff]
        %v334 = vld [vmem:[%s279 + $0x30] sm:$0xff]
        %v335 = vld [vmem:[%s279 + $0x38] sm:$0xff]
        %v336 = vld [vmem:[%s279 + $0x40] sm:$0xff]
        %v337 = vld [vmem:[%s279 + $0x48] sm:$0xff]
        %v338 = vld [vmem:[%s279 + $0x50] sm:$0xff]
        %v339 = vld [vmem:[%s279 + $0x58] sm:$0xff]
        %v340 = vld [vmem:[%s279 + $0x60] sm:$0xff]
        %v341 = vld [vmem:[%s279 + $0x68] sm:$0xff]
        %v342 = vld [vmem:[%s279 + $0x70] sm:$0xff]
        %v343 = vld [vmem:[%s279 + $0x78] sm:$0xff]
        %v344 = vld [vmem:[%s288] sm:$0xff]
        %v345 = vld [vmem:[%s288 + $0x8] sm:$0xff]
        %v346 = vld [vmem:[%s288 + $0x10] sm:$0xff]
        %v347 = vld [vmem:[%s288 + $0x18] sm:$0xff]
        %v348 = vld [vmem:[%s288 + $0x20] sm:$0xff]
        %v349 = vld [vmem:[%s288 + $0x28] sm:$0xff]
        %v350 = vld [vmem:[%s288 + $0x30] sm:$0xff]
        %v351 = vld [vmem:[%s288 + $0x38] sm:$0xff]
        %v352 = vld [vmem:[%s288 + $0x40] sm:$0xff]
        %v353 = vld [vmem:[%s288 + $0x48] sm:$0xff]
        %v354 = vld [vmem:[%s288 + $0x50] sm:$0xff]
        %v355 = vld [vmem:[%s288 + $0x58] sm:$0xff]
        %v356 = vld [vmem:[%s288 + $0x60] sm:$0xff]
        %v357 = vld [vmem:[%s288 + $0x68] sm:$0xff]
        %v358 = vld [vmem:[%s288 + $0x70] sm:$0xff]
        %v359 = vld [vmem:[%s288 + $0x78] sm:$0xff]
        %v376 = vunpack.c.l.b16 %v328
        %v377 = vunpack.c.h.b16 %v328
        %v378 = vunpack.c.l.b16 %v329
        %v379 = vunpack.c.h.b16 %v329
        %v380 = vunpack.c.l.b16 %v330
        %v381 = vunpack.c.h.b16 %v330
        %v382 = vunpack.c.l.b16 %v331
        %v383 = vunpack.c.h.b16 %v331
        %v384 = vunpack.c.l.b16 %v332
        %v385 = vunpack.c.h.b16 %v332
        %v386 = vunpack.c.l.b16 %v333
        %v387 = vunpack.c.h.b16 %v333
        %v388 = vunpack.c.l.b16 %v334
        %v389 = vunpack.c.h.b16 %v334
        %v390 = vunpack.c.l.b16 %v335
        %v391 = vunpack.c.h.b16 %v335
        %v392 = vunpack.c.l.b16 %v336
        %v393 = vunpack.c.h.b16 %v336
        %v394 = vunpack.c.l.b16 %v337
        %v395 = vunpack.c.h.b16 %v337
        %v396 = vunpack.c.l.b16 %v338
        %v397 = vunpack.c.h.b16 %v338
        %v398 = vunpack.c.l.b16 %v339
        %v399 = vunpack.c.h.b16 %v339
        %v400 = vunpack.c.l.b16 %v340
        %v401 = vunpack.c.h.b16 %v340
        %v402 = vunpack.c.l.b16 %v341
        %v403 = vunpack.c.h.b16 %v341
        %v404 = vunpack.c.l.b16 %v342
        %v405 = vunpack.c.h.b16 %v342
        %v406 = vunpack.c.l.b16 %v343
        %v407 = vunpack.c.h.b16 %v343
        %v408 = vpack.c.b16 %v378, %v376
        %v409 = vpack.c.b16 %v379, %v377
        %v410 = vpack.c.b16 %v382, %v380
        %v411 = vpack.c.b16 %v383, %v381
        %v412 = vpack.c.b16 %v386, %v384
        %v413 = vpack.c.b16 %v387, %v385
        %v414 = vpack.c.b16 %v390, %v388
        %v415 = vpack.c.b16 %v391, %v389
        %v416 = vpack.c.b16 %v394, %v392
        %v417 = vpack.c.b16 %v395, %v393
        %v418 = vpack.c.b16 %v398, %v396
        %v419 = vpack.c.b16 %v399, %v397
        %v420 = vpack.c.b16 %v402, %v400
        %v421 = vpack.c.b16 %v403, %v401
        %v422 = vpack.c.b16 %v406, %v404
        %v423 = vpack.c.b16 %v407, %v405
        %v456 = vunpack.c.l.b16 %v344
        %v457 = vunpack.c.h.b16 %v344
        %v458 = vunpack.c.l.b16 %v345
        %v459 = vunpack.c.h.b16 %v345
        %v460 = vunpack.c.l.b16 %v346
        %v461 = vunpack.c.h.b16 %v346
        %v462 = vunpack.c.l.b16 %v347
        %v463 = vunpack.c.h.b16 %v347
        %v464 = vunpack.c.l.b16 %v348
        %v465 = vunpack.c.h.b16 %v348
        %v466 = vunpack.c.l.b16 %v349
        %v467 = vunpack.c.h.b16 %v349
        %v468 = vunpack.c.l.b16 %v350
        %v469 = vunpack.c.h.b16 %v350
        %v470 = vunpack.c.l.b16 %v351
        %v471 = vunpack.c.h.b16 %v351
        %v472 = vunpack.c.l.b16 %v352
        %v473 = vunpack.c.h.b16 %v352
        %v474 = vunpack.c.l.b16 %v353
        %v475 = vunpack.c.h.b16 %v353
        %v476 = vunpack.c.l.b16 %v354
        %v477 = vunpack.c.h.b16 %v354
        %v478 = vunpack.c.l.b16 %v355
        %v479 = vunpack.c.h.b16 %v355
        %v480 = vunpack.c.l.b16 %v356
        %v481 = vunpack.c.h.b16 %v356
        %v482 = vunpack.c.l.b16 %v357
        %v483 = vunpack.c.h.b16 %v357
        %v484 = vunpack.c.l.b16 %v358
        %v485 = vunpack.c.h.b16 %v358
        %v486 = vunpack.c.l.b16 %v359
        %v487 = vunpack.c.h.b16 %v359
        %v488 = vpack.c.b16 %v458, %v456
        %v489 = vpack.c.b16 %v459, %v457
        %v490 = vpack.c.b16 %v462, %v460
        %v491 = vpack.c.b16 %v463, %v461
        %v492 = vpack.c.b16 %v466, %v464
        %v493 = vpack.c.b16 %v467, %v465
        %v494 = vpack.c.b16 %v470, %v468
        %v495 = vpack.c.b16 %v471, %v469
        %v496 = vpack.c.b16 %v474, %v472
        %v497 = vpack.c.b16 %v475, %v473
        %v498 = vpack.c.b16 %v478, %v476
        %v499 = vpack.c.b16 %v479, %v477
        %v500 = vpack.c.b16 %v482, %v480
        %v501 = vpack.c.b16 %v483, %v481
        %v502 = vpack.c.b16 %v486, %v484
        %v503 = vpack.c.b16 %v487, %v485
        %v520 = vld [vmem:[%s2] sm:$0xf]
        %v521 = vld [vmem:[%s2 + $0x4] sm:$0xf]
        %v522 = vld [vmem:[%s2 + $0x8] sm:$0xf]
        %v523 = vld [vmem:[%s2 + $0xc] sm:$0xf]
        %v524 = vld [vmem:[%s2 + $0x10] sm:$0xf]
        %v525 = vld [vmem:[%s2 + $0x14] sm:$0xf]
        %v526 = vld [vmem:[%s2 + $0x18] sm:$0xf]
        %v527 = vld [vmem:[%s2 + $0x1c] sm:$0xf]
        %v528 = vld [vmem:[%s2 + $0x20] sm:$0xf]
        %v529 = vld [vmem:[%s2 + $0x24] sm:$0xf]
        %v530 = vld [vmem:[%s2 + $0x28] sm:$0xf]
        %v531 = vld [vmem:[%s2 + $0x2c] sm:$0xf]
        %v532 = vld [vmem:[%s2 + $0x30] sm:$0xf]
        %v533 = vld [vmem:[%s2 + $0x34] sm:$0xf]
        %v534 = vld [vmem:[%s2 + $0x38] sm:$0xf]
        %v535 = vld [vmem:[%s2 + $0x3c] sm:$0xf]
        %v536 = vld [vmem:[%s2 + $0x40] sm:$0xf]
        %v537 = vld [vmem:[%s2 + $0x44] sm:$0xf]
        %v538 = vld [vmem:[%s2 + $0x48] sm:$0xf]
        %v539 = vld [vmem:[%s2 + $0x4c] sm:$0xf]
        %v540 = vld [vmem:[%s2 + $0x50] sm:$0xf]
        %v541 = vld [vmem:[%s2 + $0x54] sm:$0xf]
        %v542 = vld [vmem:[%s2 + $0x58] sm:$0xf]
        %v543 = vld [vmem:[%s2 + $0x5c] sm:$0xf]
        %v544 = vld [vmem:[%s2 + $0x60] sm:$0xf]
        %v545 = vld [vmem:[%s2 + $0x64] sm:$0xf]
        %v546 = vld [vmem:[%s2 + $0x68] sm:$0xf]
        %v547 = vld [vmem:[%s2 + $0x6c] sm:$0xf]
        %v548 = vld [vmem:[%s2 + $0x70] sm:$0xf]
        %v549 = vld [vmem:[%s2 + $0x74] sm:$0xf]
        %v550 = vld [vmem:[%s2 + $0x78] sm:$0xf]
        %v551 = vld [vmem:[%s2 + $0x7c] sm:$0xf]
        %v552 = vld [vmem:[%s3] sm:$0x1]
        %v554 = vlaneseq
        %v555 = vshrl.u32 %v554, 7
        %v556 = vsub.s32 0, %v555
        %v557 = vrot.slane %v552, %v556
        %v591 = vunpack.c.l.b16 %v520
        %v592 = vunpack.c.l.b16 %v521
        %v593 = vunpack.c.l.b16 %v522
        %v594 = vunpack.c.l.b16 %v523
        %v595 = vunpack.c.l.b16 %v524
        %v596 = vunpack.c.l.b16 %v525
        %v597 = vunpack.c.l.b16 %v526
        %v598 = vunpack.c.l.b16 %v527
        %v599 = vunpack.c.l.b16 %v528
        %v600 = vunpack.c.l.b16 %v529
        %v601 = vunpack.c.l.b16 %v530
        %v602 = vunpack.c.l.b16 %v531
        %v603 = vunpack.c.l.b16 %v532
        %v604 = vunpack.c.l.b16 %v533
        %v605 = vunpack.c.l.b16 %v534
        %v606 = vunpack.c.l.b16 %v535
        %v607 = vunpack.c.l.b16 %v536
        %v608 = vunpack.c.l.b16 %v537
        %v609 = vunpack.c.l.b16 %v538
        %v610 = vunpack.c.l.b16 %v539
        %v611 = vunpack.c.l.b16 %v540
        %v612 = vunpack.c.l.b16 %v541
        %v613 = vunpack.c.l.b16 %v542
        %v614 = vunpack.c.l.b16 %v543
        %v615 = vunpack.c.l.b16 %v544
        %v616 = vunpack.c.l.b16 %v545
        %v617 = vunpack.c.l.b16 %v546
        %v618 = vunpack.c.l.b16 %v547
        %v619 = vunpack.c.l.b16 %v548
        %v620 = vunpack.c.l.b16 %v549
        %v621 = vunpack.c.l.b16 %v550
        %v622 = vunpack.c.l.b16 %v551
        %v623 = vpack.c.b16 %v592, %v591
        %v624 = vpack.c.b16 %v594, %v593
        %v625 = vpack.c.b16 %v596, %v595
        %v626 = vpack.c.b16 %v598, %v597
        %v627 = vpack.c.b16 %v600, %v599
        %v628 = vpack.c.b16 %v602, %v601
        %v629 = vpack.c.b16 %v604, %v603
        %v630 = vpack.c.b16 %v606, %v605
        %v631 = vpack.c.b16 %v608, %v607
        %v632 = vpack.c.b16 %v610, %v609
        %v633 = vpack.c.b16 %v612, %v611
        %v634 = vpack.c.b16 %v614, %v613
        %v635 = vpack.c.b16 %v616, %v615
        %v636 = vpack.c.b16 %v618, %v617
        %v637 = vpack.c.b16 %v620, %v619
        %v638 = vpack.c.b16 %v622, %v621
        %655 = vmatprep.subr.bf16.mxu0 0
        %656 = vmatpush1.bf16.msra.mxu0 %v623
        %657 = vmatprep.subr.bf16.mxu0 0
        %658 = vmatpush1.bf16.msra.mxu0 %v624
        %659 = vmatprep.subr.bf16.mxu0 0
        %660 = vmatpush1.bf16.msra.mxu0 %v625
        %661 = vmatprep.subr.bf16.mxu0 0
        %662 = vmatpush1.bf16.msra.mxu0 %v626
        %663 = vmatprep.subr.bf16.mxu0 0
        %664 = vmatpush1.bf16.msra.mxu0 %v627
        %665 = vmatprep.subr.bf16.mxu0 0
        %666 = vmatpush1.bf16.msra.mxu0 %v628
        %667 = vmatprep.subr.bf16.mxu0 0
        %668 = vmatpush1.bf16.msra.mxu0 %v629
        %669 = vmatprep.subr.bf16.mxu0 0
        %670 = vmatpush1.bf16.msra.mxu0 %v630
        %671 = vmatprep.subr.bf16.mxu0 0
        %672 = vmatpush1.bf16.msra.mxu0 %v631
        %673 = vmatprep.subr.bf16.mxu0 0
        %674 = vmatpush1.bf16.msra.mxu0 %v632
        %675 = vmatprep.subr.bf16.mxu0 0
        %676 = vmatpush1.bf16.msra.mxu0 %v633
        %677 = vmatprep.subr.bf16.mxu0 0
        %678 = vmatpush1.bf16.msra.mxu0 %v634
        %679 = vmatprep.subr.bf16.mxu0 0
        %680 = vmatpush1.bf16.msra.mxu0 %v635
        %681 = vmatprep.subr.bf16.mxu0 0
        %682 = vmatpush1.bf16.msra.mxu0 %v636
        %683 = vmatprep.subr.bf16.mxu0 0
        %684 = vmatpush1.bf16.msra.mxu0 %v637
        %685 = vmatprep.subr.bf16.mxu0 0
        %686 = vmatpush1.bf16.msra.mxu0 %v638
        %687 = vmatprep.mubr.bf16.mxu0 %v409
        %688 = vmatmul.mubr.bf16.gmra.mrb[0].mxu0 %v408
        %v689 = vpop.f32.mrb[0].mxu0
        %v690 = vadd.f32 %v557, %v689
        %v691 = vpop.f32.mrb[0].mxu0
        %v692 = vpop.f32.mrb[0].mxu0
        %v693 = vadd.f32 %v557, %v692
        %v694 = vpop.f32.mrb[0].mxu0
        %695 = vmatprep.mubr.bf16.mxu0 %v411
        %696 = vmatmul.mubr.bf16.gmra.mrb[0].mxu0 %v410
        %v697 = vpop.f32.mrb[0].mxu0
        %v698 = vadd.f32 %v557, %v697
        %v699 = vpop.f32.mrb[0].mxu0
        %v700 = vpop.f32.mrb[0].mxu0
        %v701 = vadd.f32 %v557, %v700
        %v702 = vpop.f32.mrb[0].mxu0
        %703 = vmatprep.mubr.bf16.mxu0 %v413
        %704 = vmatmul.mubr.bf16.gmra.mrb[0].mxu0 %v412
        %v705 = vpop.f32.mrb[0].mxu0
        %v706 = vadd.f32 %v557, %v705
        %v707 = vpop.f32.mrb[0].mxu0
        %v708 = vpop.f32.mrb[0].mxu0
        %v709 = vadd.f32 %v557, %v708
        %v710 = vpop.f32.mrb[0].mxu0
        %711 = vmatprep.mubr.bf16.mxu0 %v415
        %712 = vmatmul.mubr.bf16.gmra.mrb[0].mxu0 %v414
        %v713 = vpop.f32.mrb[0].mxu0
        %v714 = vadd.f32 %v557, %v713
        %v715 = vpop.f32.mrb[0].mxu0
        %v716 = vpop.f32.mrb[0].mxu0
        %v717 = vadd.f32 %v557, %v716
        %v718 = vpop.f32.mrb[0].mxu0
        %719 = vmatprep.mubr.bf16.mxu0 %v417
        %720 = vmatmul.mubr.bf16.gmra.mrb[0].mxu0 %v416
        %v721 = vpop.f32.mrb[0].mxu0
        %v722 = vadd.f32 %v557, %v721
        %v723 = vpop.f32.mrb[0].mxu0
        %v724 = vpop.f32.mrb[0].mxu0
        %v725 = vadd.f32 %v557, %v724
        %v726 = vpop.f32.mrb[0].mxu0
        %727 = vmatprep.mubr.bf16.mxu0 %v419
        %728 = vmatmul.mubr.bf16.gmra.mrb[0].mxu0 %v418
        %v729 = vpop.f32.mrb[0].mxu0
        %v730 = vadd.f32 %v557, %v729
        %v731 = vpop.f32.mrb[0].mxu0
        %v732 = vpop.f32.mrb[0].mxu0
        %v733 = vadd.f32 %v557, %v732
        %v734 = vpop.f32.mrb[0].mxu0
        %735 = vmatprep.mubr.bf16.mxu0 %v421
        %736 = vmatmul.mubr.bf16.gmra.mrb[0].mxu0 %v420
        %v737 = vpop.f32.mrb[0].mxu0
        %v738 = vadd.f32 %v557, %v737
        %v739 = vpop.f32.mrb[0].mxu0
        %v740 = vpop.f32.mrb[0].mxu0
        %v741 = vadd.f32 %v557, %v740
        %v742 = vpop.f32.mrb[0].mxu0
        %743 = vmatprep.mubr.bf16.mxu0 %v423
        %744 = vmatmul.mubr.bf16.gmra.mrb[0].mxu0 %v422
        %v745 = vpop.f32.mrb[0].mxu0
        %v746 = vadd.f32 %v557, %v745
        %v747 = vpop.f32.mrb[0].mxu0
        %v748 = vpop.f32.mrb[0].mxu0
        %v749 = vadd.f32 %v557, %v748
        %v750 = vpop.f32.mrb[0].mxu0
        %751 = vmatprep.mubr.bf16.mxu0 %v489
        %752 = vmatmul.mubr.bf16.gmra.mrb[0].mxu0 %v488
        %v753 = vpop.f32.mrb[0].mxu0
        %v754 = vadd.f32 %v557, %v753
        %v755 = vpop.f32.mrb[0].mxu0
        %v756 = vpop.f32.mrb[0].mxu0
        %v757 = vadd.f32 %v557, %v756
        %v758 = vpop.f32.mrb[0].mxu0
        %759 = vmatprep.mubr.bf16.mxu0 %v491
        %760 = vmatmul.mubr.bf16.gmra.mrb[0].mxu0 %v490
        %v761 = vpop.f32.mrb[0].mxu0
        %v762 = vadd.f32 %v557, %v761
        %v763 = vpop.f32.mrb[0].mxu0
        %v764 = vpop.f32.mrb[0].mxu0
        %v765 = vadd.f32 %v557, %v764
        %v766 = vpop.f32.mrb[0].mxu0
        %767 = vmatprep.mubr.bf16.mxu0 %v493
        %768 = vmatmul.mubr.bf16.gmra.mrb[0].mxu0 %v492
        %v769 = vpop.f32.mrb[0].mxu0
        %v770 = vadd.f32 %v557, %v769
        %v771 = vpop.f32.mrb[0].mxu0
        %v772 = vpop.f32.mrb[0].mxu0
        %v773 = vadd.f32 %v557, %v772
        %v774 = vpop.f32.mrb[0].mxu0
        %775 = vmatprep.mubr.bf16.mxu0 %v495
        %776 = vmatmul.mubr.bf16.gmra.mrb[0].mxu0 %v494
        %v777 = vpop.f32.mrb[0].mxu0
        %v778 = vadd.f32 %v557, %v777
        %v779 = vpop.f32.mrb[0].mxu0
        %v780 = vpop.f32.mrb[0].mxu0
        %v781 = vadd.f32 %v557, %v780
        %v782 = vpop.f32.mrb[0].mxu0
        %783 = vmatprep.mubr.bf16.mxu0 %v497
        %784 = vmatmul.mubr.bf16.gmra.mrb[0].mxu0 %v496
        %v785 = vpop.f32.mrb[0].mxu0
        %v786 = vadd.f32 %v557, %v785
        %v787 = vpop.f32.mrb[0].mxu0
        %v788 = vpop.f32.mrb[0].mxu0
        %v789 = vadd.f32 %v557, %v788
        %v790 = vpop.f32.mrb[0].mxu0
        %791 = vmatprep.mubr.bf16.mxu0 %v499
        %792 = vmatmul.mubr.bf16.gmra.mrb[0].mxu0 %v498
        %v793 = vpop.f32.mrb[0].mxu0
        %v794 = vadd.f32 %v557, %v793
        %v795 = vpop.f32.mrb[0].mxu0
        %v796 = vpop.f32.mrb[0].mxu0
        %v797 = vadd.f32 %v557, %v796
        %v798 = vpop.f32.mrb[0].mxu0
        %799 = vmatprep.mubr.bf16.mxu0 %v501
        %800 = vmatmul.mubr.bf16.gmra.mrb[0].mxu0 %v500
        %v801 = vpop.f32.mrb[0].mxu0
        %v802 = vadd.f32 %v557, %v801
        %v803 = vpop.f32.mrb[0].mxu0
        %v804 = vpop.f32.mrb[0].mxu0
        %v805 = vadd.f32 %v557, %v804
        %v806 = vpop.f32.mrb[0].mxu0
        %807 = vmatprep.mubr.bf16.mxu0 %v503
        %808 = vmatmul.mubr.bf16.gmra.mrb[0].mxu0 %v502
        %v809 = vpop.f32.mrb[0].mxu0
        %v810 = vadd.f32 %v557, %v809
        %v811 = vpop.f32.mrb[0].mxu0
        %v812 = vpop.f32.mrb[0].mxu0
        %v813 = vadd.f32 %v557, %v812
        %v814 = vpop.f32.mrb[0].mxu0
        %815 = vdwg.mxu0
        %v816 = vmax.f32 %v690, 0.0
        %v817 = vmax.f32 %v693, 0.0
        %v818 = vmax.f32 %v698, 0.0
        %v819 = vmax.f32 %v701, 0.0
        %v820 = vmax.f32 %v706, 0.0
        %v821 = vmax.f32 %v709, 0.0
        %v822 = vmax.f32 %v714, 0.0
        %v823 = vmax.f32 %v717, 0.0
        %v824 = vmax.f32 %v722, 0.0
        %v825 = vmax.f32 %v725, 0.0
        %v826 = vmax.f32 %v730, 0.0
        %v827 = vmax.f32 %v733, 0.0
        %v828 = vmax.f32 %v738, 0.0
        %v829 = vmax.f32 %v741, 0.0
        %v830 = vmax.f32 %v746, 0.0
        %v831 = vmax.f32 %v749, 0.0
        %v832 = vmax.f32 %v754, 0.0
        %v833 = vmax.f32 %v757, 0.0
        %v834 = vmax.f32 %v762, 0.0
        %v835 = vmax.f32 %v765, 0.0
        %v836 = vmax.f32 %v770, 0.0
        %v837 = vmax.f32 %v773, 0.0
        %v838 = vmax.f32 %v778, 0.0
        %v839 = vmax.f32 %v781, 0.0
        %v840 = vmax.f32 %v786, 0.0
        %v841 = vmax.f32 %v789, 0.0
        %v842 = vmax.f32 %v794, 0.0
        %v843 = vmax.f32 %v797, 0.0
        %v844 = vmax.f32 %v802, 0.0
        %v845 = vmax.f32 %v805, 0.0
        %v846 = vmax.f32 %v810, 0.0
        %v847 = vmax.f32 %v813, 0.0
        %v848 = vld [vmem:[#allocation7] sm:$0xf]
        %v849 = vld [vmem:[#allocation7 + $0x4] sm:$0xf]
        %v850 = vld [vmem:[#allocation7 + $0x8] sm:$0xf]
        %v851 = vld [vmem:[#allocation7 + $0xc] sm:$0xf]
        %v852 = vld [vmem:[#allocation7 + $0x10] sm:$0xf]
        %v853 = vld [vmem:[#allocation7 + $0x14] sm:$0xf]
        %v854 = vld [vmem:[#allocation7 + $0x18] sm:$0xf]
        %v855 = vld [vmem:[#allocation7 + $0x1c] sm:$0xf]
        %v856 = vld [vmem:[#allocation7 + $0x20] sm:$0xf]
        %v857 = vld [vmem:[#allocation7 + $0x24] sm:$0xf]
        %v858 = vld [vmem:[#allocation7 + $0x28] sm:$0xf]
        %v859 = vld [vmem:[#allocation7 + $0x2c] sm:$0xf]
        %v860 = vld [vmem:[#allocation7 + $0x30] sm:$0xf]
        %v861 = vld [vmem:[#allocation7 + $0x34] sm:$0xf]
        %v862 = vld [vmem:[#allocation7 + $0x38] sm:$0xf]
        %v863 = vld [vmem:[#allocation7 + $0x3c] sm:$0xf]
        %v864 = vpack.c.bf16 %v817, %v816
        %v865 = vpack.c.bf16 %v819, %v818
        %v866 = vpack.c.bf16 %v821, %v820
        %v867 = vpack.c.bf16 %v823, %v822
        %v868 = vpack.c.bf16 %v825, %v824
        %v869 = vpack.c.bf16 %v827, %v826
        %v870 = vpack.c.bf16 %v829, %v828
        %v871 = vpack.c.bf16 %v831, %v830
        %v872 = vpack.c.bf16 %v833, %v832
        %v873 = vpack.c.bf16 %v835, %v834
        %v874 = vpack.c.bf16 %v837, %v836
        %v875 = vpack.c.bf16 %v839, %v838
        %v876 = vpack.c.bf16 %v841, %v840
        %v877 = vpack.c.bf16 %v843, %v842
        %v878 = vpack.c.bf16 %v845, %v844
        %v879 = vpack.c.bf16 %v847, %v846
        %v880 = vld [vmem:[%s5] sm:$0xff]
        %v881 = vld [vmem:[%s5 + $0x8] sm:$0xff]
        %v882 = vld [vmem:[%s5 + $0x10] sm:$0xff]
        %v883 = vld [vmem:[%s5 + $0x18] sm:$0xff]
        %v884 = vld [vmem:[%s5 + $0x20] sm:$0xff]
        %v885 = vld [vmem:[%s5 + $0x28] sm:$0xff]
        %v886 = vld [vmem:[%s5 + $0x30] sm:$0xff]
        %v887 = vld [vmem:[%s5 + $0x38] sm:$0xff]
        %v888 = vld [vmem:[%s5 + $0x40] sm:$0xff]
        %v889 = vld [vmem:[%s5 + $0x48] sm:$0xff]
        %v890 = vld [vmem:[%s5 + $0x50] sm:$0xff]
        %v891 = vld [vmem:[%s5 + $0x58] sm:$0xff]
        %v892 = vld [vmem:[%s5 + $0x60] sm:$0xff]
        %v893 = vld [vmem:[%s5 + $0x68] sm:$0xff]
        %v894 = vld [vmem:[%s5 + $0x70] sm:$0xff]
        %v895 = vld [vmem:[%s5 + $0x78] sm:$0xff]
        %897 = vset.pattern.permute.xlu0 0
        %898 = vperm.xlu0 %897, %v880
        %v899 = vpop.permute.xlu0 %898
        %902 = vset.pattern.permute.xlu0 0
        %903 = vperm.xlu0 %902, %v881
        %v904 = vpop.permute.xlu0 %903
        %907 = vset.pattern.permute.xlu0 0
        %908 = vperm.xlu0 %907, %v882
        %v909 = vpop.permute.xlu0 %908
        %912 = vset.pattern.permute.xlu0 0
        %913 = vperm.xlu0 %912, %v883
        %v914 = vpop.permute.xlu0 %913
        %917 = vset.pattern.permute.xlu0 0
        %918 = vperm.xlu0 %917, %v884
        %v919 = vpop.permute.xlu0 %918
        %922 = vset.pattern.permute.xlu0 0
        %923 = vperm.xlu0 %922, %v885
        %v924 = vpop.permute.xlu0 %923
        %927 = vset.pattern.permute.xlu0 0
        %928 = vperm.xlu0 %927, %v886
        %v929 = vpop.permute.xlu0 %928
        %932 = vset.pattern.permute.xlu0 0
        %933 = vperm.xlu0 %932, %v887
        %v934 = vpop.permute.xlu0 %933
        %937 = vset.pattern.permute.xlu0 0
        %938 = vperm.xlu0 %937, %v888
        %v939 = vpop.permute.xlu0 %938
        %942 = vset.pattern.permute.xlu0 0
        %943 = vperm.xlu0 %942, %v889
        %v944 = vpop.permute.xlu0 %943
        %947 = vset.pattern.permute.xlu0 0
        %948 = vperm.xlu0 %947, %v890
        %v949 = vpop.permute.xlu0 %948
        %952 = vset.pattern.permute.xlu0 0
        %953 = vperm.xlu0 %952, %v891
        %v954 = vpop.permute.xlu0 %953
        %957 = vset.pattern.permute.xlu0 0
        %958 = vperm.xlu0 %957, %v892
        %v959 = vpop.permute.xlu0 %958
        %962 = vset.pattern.permute.xlu0 0
        %963 = vperm.xlu0 %962, %v893
        %v964 = vpop.permute.xlu0 %963
        %967 = vset.pattern.permute.xlu0 0
        %968 = vperm.xlu0 %967, %v894
        %v969 = vpop.permute.xlu0 %968
        %972 = vset.pattern.permute.xlu0 0
        %973 = vperm.xlu0 %972, %v895
        %v974 = vpop.permute.xlu0 %973
        %v992 = vunpack.c.l.b16 %v848
        %v993 = vunpack.c.l.b16 %v849
        %v994 = vunpack.c.l.b16 %v850
        %v995 = vunpack.c.l.b16 %v851
        %v996 = vunpack.c.l.b16 %v852
        %v997 = vunpack.c.l.b16 %v853
        %v998 = vunpack.c.l.b16 %v854
        %v999 = vunpack.c.l.b16 %v855
        %v1000 = vunpack.c.l.b16 %v856
        %v1001 = vunpack.c.l.b16 %v857
        %v1002 = vunpack.c.l.b16 %v858
        %v1003 = vunpack.c.l.b16 %v859
        %v1004 = vunpack.c.l.b16 %v860
        %v1005 = vunpack.c.l.b16 %v861
        %v1006 = vunpack.c.l.b16 %v862
        %v1007 = vunpack.c.l.b16 %v863
        %v1008 = vpack.c.b16 %v993, %v992
        %v1009 = vpack.c.b16 %v995, %v994
        %v1010 = vpack.c.b16 %v997, %v996
        %v1011 = vpack.c.b16 %v999, %v998
        %v1012 = vpack.c.b16 %v1001, %v1000
        %v1013 = vpack.c.b16 %v1003, %v1002
        %v1014 = vpack.c.b16 %v1005, %v1004
        %v1015 = vpack.c.b16 %v1007, %v1006
        %1024 = vmatprep.subr.bf16.mxu0 0
        %1025 = vmatpush1.bf16.xpose.msra.mxu0 %v864
        %1026 = vmatprep.subr.bf16.mxu0 0
        %1027 = vmatpush1.bf16.xpose.msra.mxu0 %v865
        %1028 = vmatprep.subr.bf16.mxu0 0
        %1029 = vmatpush1.bf16.xpose.msra.mxu0 %v866
        %1030 = vmatprep.subr.bf16.mxu0 0
        %1031 = vmatpush1.bf16.xpose.msra.mxu0 %v867
        %1032 = vmatprep.subr.bf16.mxu0 0
        %1033 = vmatpush1.bf16.xpose.msra.mxu0 %v868
        %1034 = vmatprep.subr.bf16.mxu0 0
        %1035 = vmatpush1.bf16.xpose.msra.mxu0 %v869
        %1036 = vmatprep.subr.bf16.mxu0 0
        %1037 = vmatpush1.bf16.xpose.msra.mxu0 %v870
        %1038 = vmatprep.subr.bf16.mxu0 0
        %1039 = vmatpush1.bf16.xpose.msra.mxu0 %v871
        %1040 = vmatprep.subr.bf16.mxu0 0
        %1041 = vmatpush1.bf16.xpose.msra.mxu0 %v872
        %1042 = vmatprep.subr.bf16.mxu0 0
        %1043 = vmatpush1.bf16.xpose.msra.mxu0 %v873
        %1044 = vmatprep.subr.bf16.mxu0 0
        %1045 = vmatpush1.bf16.xpose.msra.mxu0 %v874
        %1046 = vmatprep.subr.bf16.mxu0 0
        %1047 = vmatpush1.bf16.xpose.msra.mxu0 %v875
        %1048 = vmatprep.subr.bf16.mxu0 0
        %1049 = vmatpush1.bf16.xpose.msra.mxu0 %v876
        %1050 = vmatprep.subr.bf16.mxu0 0
        %1051 = vmatpush1.bf16.xpose.msra.mxu0 %v877
        %1052 = vmatprep.subr.bf16.mxu0 0
        %1053 = vmatpush1.bf16.xpose.msra.mxu0 %v878
        %1054 = vmatprep.subr.bf16.mxu0 0
        %1055 = vmatpush1.bf16.xpose.msra.mxu0 %v879
        %1056 = vmatprep.mubr.bf16.mxu0 0
        %1057 = vmatmul.mubr.bf16.gmra.mrb[0].mxu0 %v1008
        %v1058 = vpop.f32.mrb[0].mxu0
        %v1059 = vadd.f32 %v899, %v1058
        %v1060 = vpop.f32.mrb[0].mxu0
        %v1061 = vadd.f32 %v899, %v1060
        %v1062 = vpop.f32.mrb[0].mxu0
        %v1063 = vadd.f32 %v904, %v1062
        %v1064 = vpop.f32.mrb[0].mxu0
        %v1065 = vadd.f32 %v904, %v1064
        %1066 = vmatprep.mubr.bf16.mxu0 0
        %1067 = vmatmul.mubr.bf16.gmra.mrb[0].mxu0 %v1009
        %v1068 = vpop.f32.mrb[0].mxu0
        %v1069 = vadd.f32 %v909, %v1068
        %v1070 = vpop.f32.mrb[0].mxu0
        %v1071 = vadd.f32 %v909, %v1070
        %v1072 = vpop.f32.mrb[0].mxu0
        %v1073 = vadd.f32 %v914, %v1072
        %v1074 = vpop.f32.mrb[0].mxu0
        %v1075 = vadd.f32 %v914, %v1074
        %1076 = vmatprep.mubr.bf16.mxu0 0
        %1077 = vmatmul.mubr.bf16.gmra.mrb[0].mxu0 %v1010
        %v1078 = vpop.f32.mrb[0].mxu0
        %v1079 = vadd.f32 %v919, %v1078
        %v1080 = vpop.f32.mrb[0].mxu0
        %v1081 = vadd.f32 %v919, %v1080
        %v1082 = vpop.f32.mrb[0].mxu0
        %v1083 = vadd.f32 %v924, %v1082
        %v1084 = vpop.f32.mrb[0].mxu0
        %v1085 = vadd.f32 %v924, %v1084
        %1086 = vmatprep.mubr.bf16.mxu0 0
        %1087 = vmatmul.mubr.bf16.gmra.mrb[0].mxu0 %v1011
        %v1088 = vpop.f32.mrb[0].mxu0
        %v1089 = vadd.f32 %v929, %v1088
        %v1090 = vpop.f32.mrb[0].mxu0
        %v1091 = vadd.f32 %v929, %v1090
        %v1092 = vpop.f32.mrb[0].mxu0
        %v1093 = vadd.f32 %v934, %v1092
        %v1094 = vpop.f32.mrb[0].mxu0
        %v1095 = vadd.f32 %v934, %v1094
        %1096 = vmatprep.mubr.bf16.mxu0 0
        %1097 = vmatmul.mubr.bf16.gmra.mrb[0].mxu0 %v1012
        %v1098 = vpop.f32.mrb[0].mxu0
        %v1099 = vadd.f32 %v939, %v1098
        %v1100 = vpop.f32.mrb[0].mxu0
        %v1101 = vadd.f32 %v939, %v1100
        %v1102 = vpop.f32.mrb[0].mxu0
        %v1103 = vadd.f32 %v944, %v1102
        %v1104 = vpop.f32.mrb[0].mxu0
        %v1105 = vadd.f32 %v944, %v1104
        %1106 = vmatprep.mubr.bf16.mxu0 0
        %1107 = vmatmul.mubr.bf16.gmra.mrb[0].mxu0 %v1013
        %v1108 = vpop.f32.mrb[0].mxu0
        %v1109 = vadd.f32 %v949, %v1108
        %v1110 = vpop.f32.mrb[0].mxu0
        %v1111 = vadd.f32 %v949, %v1110
        %v1112 = vpop.f32.mrb[0].mxu0
        %v1113 = vadd.f32 %v954, %v1112
        %v1114 = vpop.f32.mrb[0].mxu0
        %v1115 = vadd.f32 %v954, %v1114
        %1116 = vmatprep.mubr.bf16.mxu0 0
        %1117 = vmatmul.mubr.bf16.gmra.mrb[0].mxu0 %v1014
        %v1118 = vpop.f32.mrb[0].mxu0
        %v1119 = vadd.f32 %v959, %v1118
        %v1120 = vpop.f32.mrb[0].mxu0
        %v1121 = vadd.f32 %v959, %v1120
        %v1122 = vpop.f32.mrb[0].mxu0
        %v1123 = vadd.f32 %v964, %v1122
        %v1124 = vpop.f32.mrb[0].mxu0
        %v1125 = vadd.f32 %v964, %v1124
        %1126 = vmatprep.mubr.bf16.mxu0 0
        %1127 = vmatmul.mubr.bf16.gmra.mrb[0].mxu0 %v1015
        %v1128 = vpop.f32.mrb[0].mxu0
        %v1129 = vadd.f32 %v969, %v1128
        %v1130 = vpop.f32.mrb[0].mxu0
        %v1131 = vadd.f32 %v969, %v1130
        %v1132 = vpop.f32.mrb[0].mxu0
        %v1133 = vadd.f32 %v974, %v1132
        %v1134 = vpop.f32.mrb[0].mxu0
        %v1135 = vadd.f32 %v974, %v1134
        %1136 = vdwg.mxu0
        %v1137 = vmul.f32 %v1059, %v1061
        %v1138 = vmul.f32 %v1063, %v1065
        %v1139 = vmul.f32 %v1069, %v1071
        %v1140 = vmul.f32 %v1073, %v1075
        %v1141 = vmul.f32 %v1079, %v1081
        %v1142 = vmul.f32 %v1083, %v1085
        %v1143 = vmul.f32 %v1089, %v1091
        %v1144 = vmul.f32 %v1093, %v1095
        %v1145 = vmul.f32 %v1099, %v1101
        %v1146 = vmul.f32 %v1103, %v1105
        %v1147 = vmul.f32 %v1109, %v1111
        %v1148 = vmul.f32 %v1113, %v1115
        %v1149 = vmul.f32 %v1119, %v1121
        %v1150 = vmul.f32 %v1123, %v1125
        %v1151 = vmul.f32 %v1129, %v1131
        %v1152 = vmul.f32 %v1133, %v1135
        %v1153 = vadd.f32 %v1137, %v1138
        %v1154 = vadd.f32 %v1153, %v1139
        %v1155 = vadd.f32 %v1154, %v1140
        %v1156 = vadd.f32 %v1155, %v1141
        %v1157 = vadd.f32 %v1156, %v1142
        %v1158 = vadd.f32 %v1157, %v1143
        %v1159 = vadd.f32 %v1158, %v1144
        %v1160 = vadd.f32 %v1159, %v1145
        %v1161 = vadd.f32 %v1160, %v1146
        %v1162 = vadd.f32 %v1161, %v1147
        %v1163 = vadd.f32 %v1162, %v1148
        %v1164 = vadd.f32 %v1163, %v1149
        %v1165 = vadd.f32 %v1164, %v1150
        %v1166 = vadd.f32 %v1165, %v1151
        %v1167 = vadd.f32 %v1166, %v1152
        %v1168 = vrot.slane %v1167, 4
        %v1169 = vadd.f32 %v1167, %v1168
        %v1170 = vrot.slane %v1169, 2
        %v1171 = vadd.f32 %v1169, %v1170
        %v1172 = vrot.slane %v1171, 1
        %v1173 = vadd.f32 %v1171, %v1172
        %v1174 = vsub.f32 0.0, %v1173
        %v1175 = vmul.f32 %v1174, 1.442695
        %v1176 = vpow.pop %v1175
        %v1177 = vadd.f32 %v1176, 1.0
        %v1178 = vrcp.pop %v1177
        %1179 = vst [vmem:[%s324] sm:$0x1] %v1178
        %s1180 = sand.u32 %s170, 1
        %s1181 = scalar_lea.sflag [#allocation4], %s1180
        %s1182 = sand.u32 %s170, 1
        %s1183 = scalar_lea.vmem [#allocation8], %s1182
        // Predicated region
        $region57: #{tpu_custom_call.1} parent=43 // pred_check
          %p1184 = pneg %p180
        $region58: #{tpu_custom_call.1} parent=43 // pred_check_branch
          %1186 = sbr.rel (%p1184) target = $region60
        $region59: #{tpu_custom_call.1} parent=43 // pred_region
          %s1188 = ssub.s32 16, 16
          %1189 = vsyncadd %s1181, %s1188
          %s1190 = smul.addr %s26, 16
          %s1191 = scalar_lea.hbm %s6, %s1190
          %s1193 = sshll.u32 %s1183, 4
          %s1194 = int_to_ptr.vmem [resolvable:$true] %s1193
          %1196 = dma.vmem_to_hbm [thread:$0]  %s1194, 16, %s1191, %s1181
        $region60: #{tpu_custom_call.1} parent=43 // pred_fallthru
          _
      $region44: #{tpu_custom_call.1} parent=5 // pred_fallthru
        _
      %p1197 = scmp.le.s32.totalorder 2, %s21
      // Predicated region
      $region61: #{tpu_custom_call.1} parent=5 // pred_check
        %p1198 = pneg %p1197
      $region62: #{tpu_custom_call.1} parent=5 // pred_check_branch
        %1200 = sbr.rel (%p1198) target = $region64
      $region63: #{tpu_custom_call.1} parent=5 // pred_region
        %s1201 = ssub.s32 %s21, 2
        // Predicated region
        $region65: #{tpu_custom_call.1} parent=63 // pred_check
          %p1202 = pneg %p186
        $region66: #{tpu_custom_call.1} parent=63 // pred_check_branch
          %1204 = sbr.rel (%p1202) target = $region68
        $region67: #{tpu_custom_call.1} parent=63 // pred_region
          %s1205 = sand.u32 %s171, 1
          %s1206 = scalar_lea.sflag [#allocation4], %s1205
          %s1207 = sand.u32 %s171, 1
          %s1208 = scalar_lea.vmem [#allocation8], %s1207
          %1209 = dma.done %s1206, 16
        $region68: #{tpu_custom_call.1} parent=63 // pred_fallthru
          _
      $region64: #{tpu_custom_call.1} parent=5 // pred_fallthru
        _
    $region6: #{tpu_custom_call.1} parent=1 // loop_footer
      %s25 = sadd.s32 1, %s21
    $region7: #{tpu_custom_call.1} parent=1 // loop_footer_branch
      %20 = sbr.rel target = $region3
    $region8: #{tpu_custom_call.1} parent=1 // loop_exit
      _
    %1210 = vsyncpa [#allocation3], 1
    %s1211 = scalar_lea.sflag [#allocation3], 1
    %1212 = vsyncpa %s1211, 1
    %1213 = vsyncpa [#allocation6], 1
    %s1214 = scalar_lea.sflag [#allocation6], 1
    %1215 = vsyncpa %s1214, 1
    %1216 = vsyncpa [#allocation4], 1
    %s1217 = scalar_lea.sflag [#allocation4], 1
    %1218 = vsyncpa %s1217, 1

</llo_original>
